<compile_context>
chip_gen: v7x
topology: tpu7x:2x2x1
jax: 0.10.0
libtpu: 0.0.40
codegen_flags: <defaults>
</compile_context>

<pallas_src>
import math

import jax
import jax.numpy as jnp
from jax import lax
from jax.experimental import pallas as pl
from jax.experimental.pallas import tpu as pltpu


def _round_up(x: int, m: int) -> int:
    return ((x + m - 1) // m) * m


def _make_kernel(scale: float, eps: float, s_pad: int, ts: int, vocab: int):
    def embed_kernel(ids_ref, tok_hbm, pos_ref, gamma_ref, beta_ref, out_ref,
                     tok_buf, sem):
        n = pl.program_id(0)
        st = pl.program_id(1)
        base = n * s_pad + st * ts

        # --- DMA gather: one row-copy per token in this tile (all in flight,
        #     shared semaphore; each wait consumes exactly one copy's bytes). ---
        def issue(r, carry):
            row = jnp.clip(ids_ref[base + r], 0, vocab - 1)
            pltpu.make_async_copy(
                tok_hbm.at[pl.ds(row, 1)], tok_buf.at[pl.ds(r, 1)], sem
            ).start()
            return carry

        lax.fori_loop(0, ts, issue, 0)

        def wait(r, carry):
            pltpu.make_async_copy(
                tok_hbm.at[pl.ds(0, 1)], tok_buf.at[pl.ds(0, 1)], sem
            ).wait()
            return carry

        lax.fori_loop(0, ts, wait, 0)

        # --- Embedding combine + LayerNorm (f32 math, one-pass stats). ---
        tok = tok_buf[...].astype(jnp.float32)               # (TS, D)
        x = tok * scale + pos_ref[...].astype(jnp.float32)   # (TS, D)

        mean = jnp.mean(x, axis=-1, keepdims=True)
        mean_sq = jnp.mean(x * x, axis=-1, keepdims=True)
        var = mean_sq - mean * mean
        inv = lax.rsqrt(var + eps)
        y = (x - mean) * inv
        y = y * gamma_ref[...].astype(jnp.float32) + beta_ref[...].astype(jnp.float32)

        # TODO(synk): dropout omitted (module evaluated in inference mode).
        out_ref[...] = y.astype(out_ref.dtype)

    return embed_kernel


def embedding_forward(seq, tok_emb, pos_emb, gamma, beta, *,
                      eps: float = 1e-5,
                      max_tile_rows: int = 256,
                      out_dtype=jnp.float32):
    """seq: (N, S) int; tok_emb: (V, D); pos_emb: (L, D); gamma/beta: (D,)."""
    N, S = seq.shape
    V, D = tok_emb.shape
    L = pos_emb.shape[0]
    assert S <= L, "sequence longer than positional-embedding table"
    scale = math.sqrt(float(D))

    # Sequence tiling: TS rows per grid step, 8-row aligned for 32-bit data,
    # 16-row aligned if any packed (sub-32-bit) dtype is involved.
    itemsizes = (jnp.dtype(tok_emb.dtype).itemsize, jnp.dtype(out_dtype).itemsize)
    row_align = 8 if min(itemsizes) >= 4 else 16
    TS = min(_round_up(max_tile_rows, row_align), _round_up(S, row_align))
    S_pad = _round_up(S, TS)
    nst = S_pad // TS
    T_pad = N * S_pad

    # Token ids, flattened for SMEM scalar prefetch (padding rows use id 0).
    ids = seq.astype(jnp.int32)
    if S_pad > S:
        ids = jnp.pad(ids, ((0, 0), (0, S_pad - S)))
    ids_flat = ids.reshape(T_pad)

    # Positional slab: exactly the rows this sequence uses, padded to S_pad,
    # consumed via a plain BlockSpec indexed by the sequence-tile index.
    pos_used = pos_emb[:S]
    if S_pad > S:
        pos_used = jnp.pad(pos_used, ((0, S_pad - S), (0, 0)))

    gamma2 = gamma.reshape(1, D)
    beta2 = beta.reshape(1, D)

    kernel = _make_kernel(scale, eps, S_pad, TS, V)

    grid_spec = pltpu.PrefetchScalarGridSpec(
        num_scalar_prefetch=1,                                 # ids -> SMEM
        grid=(N, nst),
        in_specs=[
            pl.BlockSpec(memory_space=pl.ANY),                 # tok_emb stays in HBM
            pl.BlockSpec((TS, D), lambda n, st, ids: (st, 0)),  # pos slab per s-tile
            pl.BlockSpec((1, D), lambda n, st, ids: (0, 0)),    # LayerNorm gamma
            pl.BlockSpec((1, D), lambda n, st, ids: (0, 0)),    # LayerNorm beta
        ],
        out_specs=pl.BlockSpec((TS, D), lambda n, st, ids: (n * nst + st, 0)),
        scratch_shapes=[
            pltpu.VMEM((TS, D), tok_emb.dtype),                # gathered rows
            pltpu.SemaphoreType.DMA(()),                       # shared gather sem
        ],
    )

    out = pl.pallas_call(
        kernel,
        out_shape=jax.ShapeDtypeStruct((T_pad, D), out_dtype),
        grid_spec=grid_spec,
        compiler_params=pltpu.CompilerParams(
            dimension_semantics=("parallel", "parallel"),
        ),
    )(ids_flat, tok_emb, pos_used, gamma2, beta2)

    return out.reshape(N, S_pad, D)[:, :S, :]


def embedding_reference(seq, tok_emb, pos_emb, gamma, beta, *, eps=1e-5):
    D = tok_emb.shape[1]
    scale = math.sqrt(float(D))
    pos = jnp.arange(seq.shape[1])
    x = tok_emb[seq] * scale + pos_emb[pos][None, :, :]
    mean = jnp.mean(x, axis=-1, keepdims=True)
    var = jnp.mean((x - mean) ** 2, axis=-1, keepdims=True)
    xn = (x - mean) / jnp.sqrt(var + eps)
    return xn * gamma + beta


if __name__ == "__main__":
    def run_case(dim, vocab_size, max_len, N, seq_len, key):
        k_tok, k_pos, k_ids, k_g, k_b = jax.random.split(key, 5)
        tok_emb = jax.random.normal(k_tok, (vocab_size, dim), dtype=jnp.float32)
        pos_emb = jax.random.normal(k_pos, (max_len, dim), dtype=jnp.float32)
        gamma = 1.0 + 0.1 * jax.random.normal(k_g, (dim,), dtype=jnp.float32)
        beta = 0.1 * jax.random.normal(k_b, (dim,), dtype=jnp.float32)
        seq = jax.random.randint(k_ids, (N, seq_len), 0, vocab_size, dtype=jnp.int32)

        out = jax.block_until_ready(
            embedding_forward(seq, tok_emb, pos_emb, gamma, beta))
        ref = embedding_reference(seq, tok_emb, pos_emb, gamma, beta)

        assert out.shape == (N, seq_len, dim)
        err = float(jnp.max(jnp.abs(out - ref)))
        assert jnp.allclose(out, ref, atol=1e-3, rtol=1e-3), f"mismatch, max err {err}"

    key = jax.random.PRNGKey(0)
    k1, k2, k3 = jax.random.split(key, 3)
    # Lane-dense feature dim (D multiple of 128) — unmasked (TS, D) stores.
    run_case(dim=128, vocab_size=256, max_len=32, N=2, seq_len=16, key=k1)
    # Small-D config matching the earlier toy shapes (D=32).
    run_case(dim=32, vocab_size=64, max_len=16, N=2, seq_len=8, key=k2)
    # Larger vocabulary + non-multiple-of-8 sequence length (exercises padding
    # and the scalable DMA-gather path that the one-hot approach could not do).
    run_case(dim=256, vocab_size=2048, max_len=64, N=3, seq_len=37, key=k3)

    print("KERNEL_OK")
</pallas_src>

<mosaic_0001>
module attributes {stable_mosaic.version = 11 : i64} {
  func.func @embed_kernel(%arg0: i32, %arg1: i32, %arg2: memref<32xi32, #tpu.memory_space<smem>>, %arg3: memref<256x128xf32, #tpu.memory_space<any>>, %arg4: memref<16x128xf32, #tpu.memory_space<vmem>>, %arg5: memref<1x128xf32, #tpu.memory_space<vmem>>, %arg6: memref<1x128xf32, #tpu.memory_space<vmem>>, %arg7: memref<16x128xf32, #tpu.memory_space<vmem>>, %arg8: memref<16x128xf32, #tpu.memory_space<vmem>>, %arg9: memref<!tpu.dma_semaphore, #tpu.memory_space<semaphore_mem>>) attributes {dimension_semantics = [#tpu.dimension_semantics<parallel>, #tpu.dimension_semantics<parallel>], iteration_bounds = array<i64: 2, 1>, scalar_prefetch = 1 : i64, scratch_operands = 2 : i64, tpu.core_type = #tpu.core_type<tc>, window_params = [{}, {transform_indices = @transform_1, window_bounds = array<i64: 16, 128>}, {pipeline_mode = #tpu.pipeline_mode<synchronous>, transform_indices = @transform_2, window_bounds = array<i64: 1, 128>}, {pipeline_mode = #tpu.pipeline_mode<synchronous>, transform_indices = @transform_3, window_bounds = array<i64: 1, 128>}, {transform_indices = @transform_4, window_bounds = array<i64: 16, 128>}]} {
    %c16_i32 = arith.constant 16 : i32
    %0 = arith.muli %arg0, %c16_i32 : i32
    %c16_i32_0 = arith.constant 16 : i32
    %1 = arith.muli %arg1, %c16_i32_0 : i32
    %2 = arith.addi %0, %1 : i32
    %c0_i32 = arith.constant 0 : i32
    %c16_i32_1 = arith.constant 16 : i32
    %3 = arith.addi %c0_i32, %c16_i32_1 : i32
    %c1_i32 = arith.constant 1 : i32
    scf.for %arg10 = %c0_i32 to %3 step %c1_i32  : i32 {
      %35 = arith.addi %2, %arg10 : i32
      %36 = arith.index_cast %35 : i32 to index
      %37 = memref.load %arg2[%36] : memref<32xi32, #tpu.memory_space<smem>>
      %c0_i32_20 = arith.constant 0 : i32
      %c255_i32 = arith.constant 255 : i32
      %38 = arith.maxsi %c0_i32_20, %37 : i32
      %39 = arith.minsi %c255_i32, %38 : i32
      %c0_i32_21 = arith.constant 0 : i32
      %40 = tpu.memref_slice %arg3[%39, %c0_i32_21] : memref<256x128xf32, #tpu.memory_space<any>> -> memref<1x128xf32, #tpu.memory_space<any>>
      %c0_i32_22 = arith.constant 0 : i32
      %41 = tpu.memref_slice %arg8[%arg10, %c0_i32_22] : memref<16x128xf32, #tpu.memory_space<vmem>> -> memref<1x128xf32, #tpu.memory_space<vmem>>
      tpu.enqueue_dma source(%40 : memref<1x128xf32, #tpu.memory_space<any>>) target(%41 : memref<1x128xf32, #tpu.memory_space<vmem>>) target_semaphore(%arg9 : memref<!tpu.dma_semaphore, #tpu.memory_space<semaphore_mem>>)
    }
    %c16_i32_2 = arith.constant 16 : i32
    %c0_i32_3 = arith.constant 0 : i32
    %c16_i32_4 = arith.constant 16 : i32
    %4 = arith.addi %c0_i32_3, %c16_i32_4 : i32
    %c1_i32_5 = arith.constant 1 : i32
    scf.for %arg10 = %c0_i32_3 to %4 step %c1_i32_5  : i32 {
      %c0_i32_20 = arith.constant 0 : i32
      %c0_i32_21 = arith.constant 0 : i32
      %35 = tpu.memref_slice %arg3[%c0_i32_20, %c0_i32_21] : memref<256x128xf32, #tpu.memory_space<any>> -> memref<1x128xf32, #tpu.memory_space<any>>
      %c0_i32_22 = arith.constant 0 : i32
      %c0_i32_23 = arith.constant 0 : i32
      %36 = tpu.memref_slice %arg8[%c0_i32_22, %c0_i32_23] : memref<16x128xf32, #tpu.memory_space<vmem>> -> memref<1x128xf32, #tpu.memory_space<vmem>>
      tpu.wait_dma2 semaphore(%arg9 : memref<!tpu.dma_semaphore, #tpu.memory_space<semaphore_mem>>) src(%35 : memref<1x128xf32, #tpu.memory_space<any>>) dst(%36 : memref<1x128xf32, #tpu.memory_space<vmem>>)
    }
    %c0 = arith.constant 0 : index
    %c0_6 = arith.constant 0 : index
    %5 = vector.load %arg8[%c0, %c0_6] : memref<16x128xf32, #tpu.memory_space<vmem>>, vector<16x128xf32>
    %cst = arith.constant 11.3137083 : f32
    %6 = vector.broadcast %cst : f32 to vector<16x128xf32>
    %7 = arith.mulf %5, %6 : vector<16x128xf32>
    %c0_7 = arith.constant 0 : index
    %c0_8 = arith.constant 0 : index
    %8 = vector.load %arg4[%c0_7, %c0_8] : memref<16x128xf32, #tpu.memory_space<vmem>>, vector<16x128xf32>
    %9 = arith.addf %7, %8 : vector<16x128xf32>
    %cst_9 = arith.constant dense<0.000000e+00> : vector<16xf32>
    %10 = vector.multi_reduction <add>, %9, %cst_9 [1] : vector<16x128xf32> to vector<16xf32>
    %11 = vector.shape_cast %10 : vector<16xf32> to vector<16x1xf32>
    %cst_10 = arith.constant 1.280000e+02 : f32
    %12 = vector.broadcast %cst_10 : f32 to vector<16x1xf32>
    %13 = arith.divf %11, %12 : vector<16x1xf32>
    %14 = arith.mulf %9, %9 : vector<16x128xf32>
    %cst_11 = arith.constant dense<0.000000e+00> : vector<16xf32>
    %15 = vector.multi_reduction <add>, %14, %cst_11 [1] : vector<16x128xf32> to vector<16xf32>
    %16 = vector.shape_cast %15 : vector<16xf32> to vector<16x1xf32>
    %cst_12 = arith.constant 1.280000e+02 : f32
    %17 = vector.broadcast %cst_12 : f32 to vector<16x1xf32>
    %18 = arith.divf %16, %17 : vector<16x1xf32>
    %19 = arith.mulf %13, %13 : vector<16x1xf32>
    %20 = arith.subf %18, %19 : vector<16x1xf32>
    %cst_13 = arith.constant 9.99999974E-6 : f32
    %21 = vector.broadcast %cst_13 : f32 to vector<16x1xf32>
    %22 = arith.addf %20, %21 : vector<16x1xf32>
    %23 = math.rsqrt %22 : vector<16x1xf32>
    %24 = vector.broadcast %13 : vector<16x1xf32> to vector<16x128xf32>
    %25 = arith.subf %9, %24 : vector<16x128xf32>
    %26 = vector.broadcast %23 : vector<16x1xf32> to vector<16x128xf32>
    %27 = arith.mulf %25, %26 : vector<16x128xf32>
    %c0_14 = arith.constant 0 : index
    %c0_15 = arith.constant 0 : index
    %28 = vector.load %arg5[%c0_14, %c0_15] : memref<1x128xf32, #tpu.memory_space<vmem>>, vector<1x128xf32>
    %29 = vector.broadcast %28 : vector<1x128xf32> to vector<16x128xf32>
    %30 = arith.mulf %27, %29 : vector<16x128xf32>
    %c0_16 = arith.constant 0 : index
    %c0_17 = arith.constant 0 : index
    %31 = vector.load %arg6[%c0_16, %c0_17] : memref<1x128xf32, #tpu.memory_space<vmem>>, vector<1x128xf32>
    %32 = vector.broadcast %31 : vector<1x128xf32> to vector<16x128xf32>
    %33 = arith.addf %30, %32 : vector<16x128xf32>
    %c0_18 = arith.constant 0 : index
    %c0_19 = arith.constant 0 : index
    %34 = vector.load %arg7[%c0_18, %c0_19] : memref<16x128xf32, #tpu.memory_space<vmem>>, vector<16x128xf32>
    tpu.vector_store %arg7[%c0_18, %c0_19], %33 {strides = array<i32>} : memref<16x128xf32, #tpu.memory_space<vmem>>, vector<16x128xf32>,
    return
  }
  func.func @transform_1(%arg0: i32, %arg1: i32, %arg2: memref<32xi32, #tpu.memory_space<smem>>) -> (i32, i32) {
    %c0_i32 = arith.constant 0 : i32
    %c0_i32_0 = arith.constant 0 : i32
    return %arg1, %c0_i32 : i32, i32
  }
  func.func @transform_2(%arg0: i32, %arg1: i32, %arg2: memref<32xi32, #tpu.memory_space<smem>>) -> (i32, i32) {
    %c0_i32 = arith.constant 0 : i32
    %c0_i32_0 = arith.constant 0 : i32
    %c0_i32_1 = arith.constant 0 : i32
    return %c0_i32, %c0_i32_0 : i32, i32
  }
  func.func @transform_3(%arg0: i32, %arg1: i32, %arg2: memref<32xi32, #tpu.memory_space<smem>>) -> (i32, i32) {
    %c0_i32 = arith.constant 0 : i32
    %c0_i32_0 = arith.constant 0 : i32
    %c0_i32_1 = arith.constant 0 : i32
    return %c0_i32, %c0_i32_0 : i32, i32
  }
  func.func @transform_4(%arg0: i32, %arg1: i32, %arg2: memref<32xi32, #tpu.memory_space<smem>>) -> (i32, i32) {
    %c1_i32 = arith.constant 1 : i32
    %0 = arith.muli %arg0, %c1_i32 : i32
    %1 = arith.addi %0, %arg1 : i32
    %c0_i32 = arith.constant 0 : i32
    %c0_i32_0 = arith.constant 0 : i32
    return %1, %c0_i32 : i32, i32
  }
}

</mosaic_0001>

<llo_original>
// kernel: tpu_custom_call.1
$region0: #{tpu_custom_call.1}
  #allocation0 [shape = 'u32[]', space=smem, size = 0x4, offset = 0x4, fixed_abs, tag = 'smem constant byte address 0x4 - core index']
  #allocation1 [shape = 'u32[144,128]{1,0:T(1,128)}', space=vmem, size = 0x12000, scoped, tag = 'internal scratch']
  #allocation2 [shape = 'f32[16,128]{1,0:T(8,128)}', space=vmem, size = 0x2000, scoped, tag = 'scratch operand']
  #allocation3 [shape = 's32[1]{0}', space=sflag, size = 0x4, scoped, tag = 'scratch operand']
  #allocation4 [shape = 's32[1]{0}', space=sflag, size = 0x4, scoped, tag = 'scoped memory for tpu_custom_call.1']
  #allocation5 [shape = 'u8[512]{0}', space=smem, size = 0x200, scoped, tag = 'prefetched SMEM operand 0']
  #allocation10 [shape = 's32[]', space=sflag, size = 0x4, offset = 0, fixed_abs, tag = 'sflag constant byte address 0x0 - dummy sync flag']
  #allocation11 [shape = 's32[]', space=sflag, size = 0x4, offset = 0, fixed_abs, tag = 'sflag constant byte address 0x0 - dummy sync flag']
  #allocation12 [shape = 'u32[]', space=smem, size = 0x4, offset = 0x44, fixed_abs, tag = 'smem constant byte address 0x44 - assertion arg 0']
  #allocation13 [shape = 'u32[]', space=smem, size = 0x4, offset = 0x48, fixed_abs, tag = 'smem constant byte address 0x48 - assertion arg 1']
  %s0 = inlined_call_operand.hbm [shape: s32[32], index: 0, kind: input, shape index: {}]
  %s1 = inlined_call_operand.hbm [shape: f32[256,128], index: 1, kind: input, shape index: {}]
  %s2 = inlined_call_operand.hbm [shape: f32[16,128], index: 2, kind: input, shape index: {}]
  %s3 = inlined_call_operand.vmem [shape: f32[1,128], index: 3, kind: input, shape index: {}]
  %s4 = inlined_call_operand.vmem [shape: f32[1,128], index: 4, kind: input, shape index: {}]
  %s5 = inlined_call_operand.hbm [shape: f32[32,128], index: 5, kind: output, shape index: {}]
  %s6 = sld [smem:[#allocation0]]
  $region67: #{tpu_custom_call.1} parent=0
    _
  %s8 = ssub.s32 1, %s6
  %s9 = scalar_select 0, %s8, %s6
  %11 = dma.hbm_to_smem %s0, 16, [#allocation5], [#allocation4]
  %12 = dma.done [#allocation4], 16
  %13 = sfence
  $region1: #{tpu_custom_call.1} parent=0
    #allocation6 [shape = 'u8[8192]{0}', space=vmem, size = 0x2000, scoped, tag = 'input window, operand 2, single buffered']
    #allocation7 [shape = 's32[2]{0}', space=sflag, size = 0x8, scoped, tag = 'scoped memory for tpu_custom_call.1']
    #allocation8 [shape = 's32[2]{0}', space=sflag, size = 0x8, scoped, tag = 'scoped memory for tpu_custom_call.1']
    #allocation9 [shape = 'u8[16384]{0}', space=vmem, size = 0x4000, scoped, tag = 'output window, operand 0']
    %14 = vsyncpa [#allocation7], 0
    %15 = vsyncpa [#allocation8], 0
    %s16 = scalar_lea.sflag [#allocation8], 1
    %17 = vsyncpa %s16, 0
    loop: start=0, step=1, limit=4
    $region2: #{tpu_custom_call.1} parent=1 // loop_pre_header
      _
    $region3: #{tpu_custom_call.1} parent=1 // loop_header
      %s19 = sphi 0, %s23
      %p20 = scmp.ge.s32.totalorder %s19, 4
      %s26 = sphi 0, %s38
      %s27 = sphi 0, %s34
      %s28 = sphi 0, %s26
      %s29 = sphi 0, %s27
      %s30 = sphi 0, %s28
      %s31 = sphi 0, %s29
      %s41 = sphi 0, %s43
      %s44 = sphi 0, %s41
      %s45 = sphi 0, %s44
      %s61 = sphi 0, %s45
      %s65 = sphi 0, %s65
      %s67 = sphi 0, %s65
      %s68 = sphi 0, %s67
      %s82 = sphi 0, %s68
      %s86 = sphi 0, %s86
      %s88 = sphi 0, %s86
      %s89 = sphi 0, %s88
      %s103 = sphi 0, %s89
      %s111 = sphi 0, %s113
      %s114 = sphi 0, %s111
      %s115 = sphi 0, %s114
      %s131 = sphi 0, %s115
    $region4: #{tpu_custom_call.1} parent=1 // loop_header_branch
      %22 = sbr.rel (%p20) target = $region8
    $region5: #{tpu_custom_call.1} parent=1 // loop_body
      %s24 = ssub.s32 %s19, 1
      %s25 = ssub.s32 %s19, 2
      %s32 = sadd.s32 1, %s27
      %p33 = scmp.ge.s32.totalorder %s32, 1
      %s34 = scalar_select %p33, 0, %s32
      %s35 = sadd.s32 1, %s26
      %s36 = scalar_select %p33, %s35, %s26
      %p37 = scmp.ge.s32.totalorder %s36, 2
      %s38 = scalar_select %p37, 0, %s36
      %s39 = ssub.s32 %s27, %s34
      %p40 = scmp.eq.s32.totalorder %s39, 0
      %s42 = sadd.s32 %s41, 1
      %s43 = scalar_select %p40, %s41, %s42
      %p46 = pneg %p40
      %p47 = scmp.eq.s32.totalorder %s19, 1
      %p48 = por %p46, %p47
      %p49 = scmp.ne.s32.totalorder %s41, %s44
      %p50 = scmp.eq.s32.totalorder %s19, 0
      %p51 = por %p49, %p50
      %p52 = scmp.ne.s32.totalorder %s41, %s44
      %p53 = scmp.eq.s32.totalorder %s24, 1
      %p54 = por %p52, %p53
      %p55 = scmp.ne.s32.totalorder %s44, %s45
      %p56 = scmp.eq.s32.totalorder %s24, 0
      %p57 = por %p55, %p56
      %p58 = scmp.ne.s32.totalorder %s44, %s45
      %p59 = scmp.eq.s32.totalorder %s25, 1
      %p60 = por %p58, %p59
      %p62 = scmp.ne.s32.totalorder %s45, %s61
      %p63 = scmp.eq.s32.totalorder %s25, 0
      %p64 = por %p62, %p63
      %s66 = sadd.s32 %s65, 1
      %p69 = scmp.eq.s32.totalorder %s19, 1
      %p70 = scmp.ne.s32.totalorder %s65, %s67
      %p71 = scmp.eq.s32.totalorder %s19, 0
      %p72 = por %p70, %p71
      %p73 = scmp.ne.s32.totalorder %s65, %s67
      %p74 = scmp.eq.s32.totalorder %s24, 1
      %p75 = por %p73, %p74
      %p76 = scmp.ne.s32.totalorder %s67, %s68
      %p77 = scmp.eq.s32.totalorder %s24, 0
      %p78 = por %p76, %p77
      %p79 = scmp.ne.s32.totalorder %s67, %s68
      %p80 = scmp.eq.s32.totalorder %s25, 1
      %p81 = por %p79, %p80
      %p83 = scmp.ne.s32.totalorder %s68, %s82
      %p84 = scmp.eq.s32.totalorder %s25, 0
      %p85 = por %p83, %p84
      %s87 = sadd.s32 %s86, 1
      %p90 = scmp.eq.s32.totalorder %s19, 1
      %p91 = scmp.ne.s32.totalorder %s86, %s88
      %p92 = scmp.eq.s32.totalorder %s19, 0
      %p93 = por %p91, %p92
      %p94 = scmp.ne.s32.totalorder %s86, %s88
      %p95 = scmp.eq.s32.totalorder %s24, 1
      %p96 = por %p94, %p95
      %p97 = scmp.ne.s32.totalorder %s88, %s89
      %p98 = scmp.eq.s32.totalorder %s24, 0
      %p99 = por %p97, %p98
      %p100 = scmp.ne.s32.totalorder %s88, %s89
      %p101 = scmp.eq.s32.totalorder %s25, 1
      %p102 = por %p100, %p101
      %p104 = scmp.ne.s32.totalorder %s89, %s103
      %p105 = scmp.eq.s32.totalorder %s25, 0
      %p106 = por %p104, %p105
      %s107 = sadd.s32 %s26, %s27
      %s108 = sadd.s32 %s38, %s34
      %s109 = ssub.s32 %s107, %s108
      %p110 = scmp.eq.s32.totalorder %s109, 0
      %s112 = sadd.s32 %s111, 1
      %s113 = scalar_select %p110, %s111, %s112
      %p116 = pneg %p110
      %p117 = scmp.eq.s32.totalorder %s19, 1
      %p118 = por %p116, %p117
      %p119 = scmp.ne.s32.totalorder %s111, %s114
      %p120 = scmp.eq.s32.totalorder %s19, 0
      %p121 = por %p119, %p120
      %p122 = scmp.ne.s32.totalorder %s111, %s114
      %p123 = scmp.eq.s32.totalorder %s24, 1
      %p124 = por %p122, %p123
      %p125 = scmp.ne.s32.totalorder %s114, %s115
      %p126 = scmp.eq.s32.totalorder %s24, 0
      %p127 = por %p125, %p126
      %p128 = scmp.ne.s32.totalorder %s114, %s115
      %p129 = scmp.eq.s32.totalorder %s25, 1
      %p130 = por %p128, %p129
      %p132 = scmp.ne.s32.totalorder %s115, %s131
      %p133 = scmp.eq.s32.totalorder %s25, 0
      %p134 = por %p132, %p133
      %p135 = scmp.le.s32.totalorder 1, %s19
      %p136 = scmp.lt.s32.totalorder %s19, 3
      %p137 = pnand %p135, %p136
      %p138 = pneg %p137
      // Predicated region
      $region9: #{tpu_custom_call.1} parent=5 // pred_check
        _
      $region10: #{tpu_custom_call.1} parent=5 // pred_check_branch
        %140 = sbr.rel (%p137) target = $region12
      $region11: #{tpu_custom_call.1} parent=5 // pred_region
        %s141 = ssub.s32 %s19, 1
        // Predicated region
        $region13: #{tpu_custom_call.1} parent=11 // pred_check
          %p142 = pneg %p57
        $region14: #{tpu_custom_call.1} parent=11 // pred_check_branch
          %144 = sbr.rel (%p142) target = $region16
        $region15: #{tpu_custom_call.1} parent=11 // pred_region
          %s145 = smul.u32 2, %s29
          %s147 = ssub.s32 256, 256
          %148 = vsyncadd [#allocation7], %s147
          %s149 = smul.addr %s145, 128
          %s150 = scalar_lea.hbm %s2, %s149
          %s151 = sshll.u32 [#allocation6], 4
          %s152 = int_to_ptr.vmem [resolvable:$true] %s151
          %157 = dma.hbm_to_vmem [thread:$0]  %s150, 256, %s152, [#allocation7], 128, 128, 8
        $region16: #{tpu_custom_call.1} parent=11 // pred_fallthru
          _
        // Predicated region
        $region17: #{tpu_custom_call.1} parent=11 // pred_check
          %p158 = pneg %p78
        $region18: #{tpu_custom_call.1} parent=11 // pred_check_branch
          %160 = sbr.rel (%p158) target = $region20
        $region19: #{tpu_custom_call.1} parent=11 // pred_region
          _
        $region20: #{tpu_custom_call.1} parent=11 // pred_fallthru
          _
        // Predicated region
        $region21: #{tpu_custom_call.1} parent=11 // pred_check
          %p161 = pneg %p99
        $region22: #{tpu_custom_call.1} parent=11 // pred_check_branch
          %163 = sbr.rel (%p161) target = $region24
        $region23: #{tpu_custom_call.1} parent=11 // pred_region
          _
        $region24: #{tpu_custom_call.1} parent=11 // pred_fallthru
          _
      $region12: #{tpu_custom_call.1} parent=5 // pred_fallthru
        _
      %p164 = scmp.lt.s32.totalorder %s19, 2
      // Predicated region
      $region25: #{tpu_custom_call.1} parent=5 // pred_check
        %p165 = pneg %p164
      $region26: #{tpu_custom_call.1} parent=5 // pred_check_branch
        %167 = sbr.rel (%p165) target = $region28
      $region27: #{tpu_custom_call.1} parent=5 // pred_region
        _
      $region28: #{tpu_custom_call.1} parent=5 // pred_fallthru
        _
      %p168 = scmp.le.s32.totalorder 1, %s19
      %p169 = scmp.lt.s32.totalorder %s19, 3
      %p170 = pnand %p168, %p169
      %p171 = pneg %p170
      // Predicated region
      $region29: #{tpu_custom_call.1} parent=5 // pred_check
        _
      $region30: #{tpu_custom_call.1} parent=5 // pred_check_branch
        %173 = sbr.rel (%p170) target = $region32
      $region31: #{tpu_custom_call.1} parent=5 // pred_region
        %s174 = ssub.s32 %s19, 1
        // Predicated region
        $region33: #{tpu_custom_call.1} parent=31 // pred_check
          %p175 = pneg %p57
        $region34: #{tpu_custom_call.1} parent=31 // pred_check_branch
          %177 = sbr.rel (%p175) target = $region36
        $region35: #{tpu_custom_call.1} parent=31 // pred_region
          %178 = dma.done [#allocation7], 256
        $region36: #{tpu_custom_call.1} parent=31 // pred_fallthru
          _
        %p179 = pneg %p57
        %p180 = pneg %p54
        %p181 = pneg %p78
        %p182 = pneg %p75
        %p183 = pneg %p99
        %p184 = pneg %p96
        %p185 = pneg %p127
        %p186 = pneg %p124
        %s187 = sand.u32 %s114, 1
        %s188 = scalar_lea.sflag [#allocation8], %s187
        %s189 = sand.u32 %s114, 1
        %s190 = smul.addr %s189, 16
        %s191 = scalar_lea.vmem [#allocation9], %s190
        %s192 = smul.u32 2, %s29
        %s193 = sadd.s32 %s28, %s29
        %s194 = smul.u32 2, %s193
        %s195 = smul.u32 %s28, 16
        %s196 = smul.u32 %s29, 16
        %s197 = sadd.s32 %s195, %s196
        loop: start=0, step=1, limit=16
        $region37: #{tpu_custom_call.1} parent=31 // loop_pre_header
          _
        $region38: #{tpu_custom_call.1} parent=31 // loop_header
          %s199 = sphi 0, %s203
          %p200 = scmp.ge.s32.totalorder %s199, 16
        $region39: #{tpu_custom_call.1} parent=31 // loop_header_branch
          %202 = sbr.rel (%p200) target = $region43
        $region40: #{tpu_custom_call.1} parent=31 // loop_body
          %s204 = sadd.s32 %s197, %s199
          %s205 = sld [smem:[#allocation5 + %s204]]
          %p206 = scmp.gt.s32.totalorder %s205, 0
          %s207 = scalar_select %p206, %s205, 0
          %p208 = scmp.lt.s32.totalorder %s207, 255
          %s209 = scalar_select %p208, %s207, 255
          %s210 = smul.addr %s209, 16
          %s211 = scalar_lea.hbm %s1, %s210
          %s212 = scalar_lea.vmem [#allocation2], %s199
          // Predicated region
          $region44: #{tpu_custom_call.1} parent=40 // pred_check
            _
          $region45: #{tpu_custom_call.1} parent=40 // pred_check_branch
            %214 = sbr.rel target = $region47
          $region46: #{tpu_custom_call.1} parent=40 // pred_region
            %215 = sst [smem:[#allocation12]] [#allocation11]
            %216 = sst [smem:[#allocation13]] [#allocation10]
          $region47: #{tpu_custom_call.1} parent=40 // pred_fallthru
            _
          %218 = shalt.err (0)
          %s220 = sshll.u32 %s212, 4
          %s221 = int_to_ptr.vmem [resolvable:$true] %s220
          %223 = dma.hbm_to_vmem [thread:$0]  %s211, 16, %s221, [#allocation3]
        $region41: #{tpu_custom_call.1} parent=31 // loop_footer
          %s203 = sadd.s32 1, %s199
        $region42: #{tpu_custom_call.1} parent=31 // loop_footer_branch
          %198 = sbr.rel target = $region38
        $region43: #{tpu_custom_call.1} parent=31 // loop_exit
          _
        loop: start=0, step=1, limit=16
        $region48: #{tpu_custom_call.1} parent=31 // loop_pre_header
          _
        $region49: #{tpu_custom_call.1} parent=31 // loop_header
          %s225 = sphi 0, %s229
          %p226 = scmp.ge.s32.totalorder %s225, 16
        $region50: #{tpu_custom_call.1} parent=31 // loop_header_branch
          %228 = sbr.rel (%p226) target = $region54
        $region51: #{tpu_custom_call.1} parent=31 // loop_body
          %s230 = smul.u32 1, 1
          %s231 = sshll.u32 %s230, 4
          %232 = dma.done [#allocation3], %s231
        $region52: #{tpu_custom_call.1} parent=31 // loop_footer
          %s229 = sadd.s32 1, %s225
        $region53: #{tpu_custom_call.1} parent=31 // loop_footer_branch
          %224 = sbr.rel target = $region49
        $region54: #{tpu_custom_call.1} parent=31 // loop_exit
          _
        %v233 = vld [vmem:[#allocation2] sm:$0xff]
        %v234 = vld [vmem:[#allocation2 + $0x8] sm:$0xff]
        %v235 = vmul.f32 %v233, 11.313708
        %v236 = vmul.f32 %v234, 11.313708
        %v237 = vld [vmem:[#allocation6] sm:$0xff]
        %v238 = vld [vmem:[#allocation6 + $0x8] sm:$0xff]
        %v239 = vadd.f32 %v235, %v237
        %v240 = vadd.f32 %v236, %v238
        %241 = vadd.xlane.f32.xlu0 %v239
        %v242 = vpop.xlane.xlu0 %241
        %243 = vadd.xlane.f32.xlu0 %v240
        %v244 = vpop.xlane.xlu0 %243
        %v245 = vrcp.pop 128.0
        %v246 = vmul.f32 %v242, %v245
        %v247 = vmul.f32 %v244, %v245
        %v248 = vmul.f32 %v239, %v239
        %v249 = vmul.f32 %v240, %v240
        %250 = vadd.xlane.f32.xlu0 %v248
        %v251 = vpop.xlane.xlu0 %250
        %252 = vadd.xlane.f32.xlu0 %v249
        %v253 = vpop.xlane.xlu0 %252
        %v254 = vmul.f32 %v251, %v245
        %v255 = vmul.f32 %v253, %v245
        %v256 = vmul.f32 %v246, %v246
        %v257 = vmul.f32 %v247, %v247
        %v258 = vsub.f32 %v254, %v256
        %v259 = vsub.f32 %v255, %v257
        %v260 = vadd.f32 %v258, 1e-05
        %v261 = vadd.f32 %v259, 1e-05
        %v262 = vrsqrt.pop %v260
        %v263 = vrsqrt.pop %v261
        %v264 = vsub.f32 %v239, %v246
        %v265 = vsub.f32 %v240, %v247
        %v266 = vmul.f32 %v264, %v262
        %v267 = vmul.f32 %v265, %v263
        %v268 = vld [vmem:[%s3] sm:$0x1]
        %v270 = vlaneseq
        %v271 = vshrl.u32 %v270, 7
        %v272 = vsub.s32 0, %v271
        %v273 = vrot.slane %v268, %v272
        %v275 = vmul.f32 %v266, %v273
        %v276 = vmul.f32 %v267, %v273
        %v277 = vld [vmem:[%s4] sm:$0x1]
        %v279 = vlaneseq
        %v280 = vshrl.u32 %v279, 7
        %v281 = vsub.s32 0, %v280
        %v282 = vrot.slane %v277, %v281
        %v284 = vadd.f32 %v275, %v282
        %v285 = vadd.f32 %v276, %v282
        %286 = vst [vmem:[%s191] sm:$0xff] %v284
        %287 = vst [vmem:[%s191 + $0x8] sm:$0xff] %v285
        %s288 = sand.u32 %s114, 1
        %s289 = scalar_lea.sflag [#allocation8], %s288
        %s290 = sand.u32 %s114, 1
        %s291 = smul.addr %s290, 16
        %s292 = scalar_lea.vmem [#allocation9], %s291
        // Predicated region
        $region55: #{tpu_custom_call.1} parent=31 // pred_check
          %p293 = pneg %p124
        $region56: #{tpu_custom_call.1} parent=31 // pred_check_branch
          %295 = sbr.rel (%p293) target = $region58
        $region57: #{tpu_custom_call.1} parent=31 // pred_region
          %s296 = sadd.s32 %s28, %s29
          %s297 = smul.u32 2, %s296
          %s299 = ssub.s32 256, 256
          %300 = vsyncadd %s289, %s299
          %s301 = smul.addr %s297, 128
          %s302 = scalar_lea.hbm %s5, %s301
          %s303 = sshll.u32 %s292, 4
          %s304 = int_to_ptr.vmem [resolvable:$true] %s303
          %309 = dma.vmem_to_hbm [thread:$0]  %s304, 256, %s302, %s289, 128, 128, 8
        $region58: #{tpu_custom_call.1} parent=31 // pred_fallthru
          _
      $region32: #{tpu_custom_call.1} parent=5 // pred_fallthru
        _
      %p310 = scmp.le.s32.totalorder 2, %s19
      // Predicated region
      $region59: #{tpu_custom_call.1} parent=5 // pred_check
        %p311 = pneg %p310
      $region60: #{tpu_custom_call.1} parent=5 // pred_check_branch
        %313 = sbr.rel (%p311) target = $region62
      $region61: #{tpu_custom_call.1} parent=5 // pred_region
        %s314 = ssub.s32 %s19, 2
        // Predicated region
        $region63: #{tpu_custom_call.1} parent=61 // pred_check
          %p315 = pneg %p130
        $region64: #{tpu_custom_call.1} parent=61 // pred_check_branch
          %317 = sbr.rel (%p315) target = $region66
        $region65: #{tpu_custom_call.1} parent=61 // pred_region
          %s318 = sand.u32 %s115, 1
          %s319 = scalar_lea.sflag [#allocation8], %s318
          %s320 = sand.u32 %s115, 1
          %s321 = smul.addr %s320, 16
          %s322 = scalar_lea.vmem [#allocation9], %s321
          %323 = dma.done %s319, 256
        $region66: #{tpu_custom_call.1} parent=61 // pred_fallthru
          _
      $region62: #{tpu_custom_call.1} parent=5 // pred_fallthru
        _
    $region6: #{tpu_custom_call.1} parent=1 // loop_footer
      %s23 = sadd.s32 1, %s19
    $region7: #{tpu_custom_call.1} parent=1 // loop_footer_branch
      %18 = sbr.rel target = $region3
    $region8: #{tpu_custom_call.1} parent=1 // loop_exit
      _
    %324 = vsyncpa [#allocation7], 1
    %s325 = scalar_lea.sflag [#allocation7], 1
    %326 = vsyncpa %s325, 1
    %327 = vsyncpa [#allocation8], 1
    %s328 = scalar_lea.sflag [#allocation8], 1
    %329 = vsyncpa %s328, 1
  %330 = vsyncmov [#allocation3]
  %s331 = vpop.sfrf %330
  %p332 = scmp.eq.s32.totalorder %s331, 0
  %p333 = pneg %p332
  %335 = shalt.err (%p333)

</llo_original>
